<compile_context>
chip_gen: v7x
topology: tpu7x:2x2x1
jax: 0.10.0
libtpu: 0.0.40
codegen_flags: <defaults>
</compile_context>

<pallas_src>
import math
import functools

import jax
import jax.numpy as jnp
from jax import lax
from jax.experimental import pallas as pl
from jax.experimental.pallas import tpu as pltpu

LN2 = math.log(2.0)

# Below this batch size, skip Pallas entirely (launch/DMA overhead dominated).
_JNP_DISPATCH_THRESHOLD = 4096
# Above this element count, use the chunked "arbitrary" reduction grid.
# 65536 f32 elements * 2 inputs * 2 pipeline buffers ~= 1 MiB VMEM -> safe on
# every TPU generation (incl. v7x 32 MiB scoped default).
_SINGLE_BLOCK_MAX_ELEMS = 8 * 8192


def _default_chunk_cols():
    """Chunk width for the gridded path, sized per HBM bandwidth generation."""
    try:
        kind = jax.devices()[0].device_kind.lower()
    except Exception:  # pragma: no cover - defensive
        kind = ""
    # v7x has ~2.3x the HBM BW of v6e: use larger chunks so the fixed ~0.35us
    # per-grid-step cost stays <10-15% of step time.
    if "v7" in kind or "7x" in kind:
        return 16384
    return 8192


# -----------------------------------------------------------------------------
# Kernels
# -----------------------------------------------------------------------------
def _glow_loss_single_block_kernel(log_p_ref, log_det_ref, out_ref, *,
                                   base_loss, inv_b, scale):
    """Whole batch in one block.  Output (1,128): lanes 0..2 = bpd triple."""
    log_p = log_p_ref[...].astype(jnp.float32)
    log_det = log_det_ref[...].astype(jnp.float32)

    inv_b_f = jnp.float32(inv_b)
    scale_f = jnp.float32(scale)
    base_f = jnp.float32(base_loss)

    # Two reductions only; everything else is scalar math.
    mean_p = jnp.sum(log_p) * inv_b_f
    mean_d = jnp.sum(log_det) * inv_b_f

    # mean(-(base + log_p + mean_d)) * scale == -(base + mean_p + mean_d) * scale
    loss_bpd = -(base_f + mean_p + mean_d) * scale_f
    logp_bpd = mean_p * scale_f
    logdet_bpd = mean_d * scale_f

    lane = lax.broadcasted_iota(jnp.int32, out_ref.shape, 1)
    out_ref[...] = jnp.where(
        lane == 0, loss_bpd,
        jnp.where(lane == 1, logp_bpd,
                  jnp.where(lane == 2, logdet_bpd, jnp.float32(0.0))))


def _glow_loss_chunked_kernel(log_p_ref, log_det_ref, out_ref,
                              acc_p_ref, acc_d_ref, *, inv_b):
    """Chunked reduction over the batch.

    grid = (n_splits, n_chunks_per_split); axis 0 is "parallel" (TensorCore
    split on v7x), axis 1 is the "arbitrary" reduction axis.  Each split
    writes one (1,128) row: lane0 = partial mean(log_p), lane1 = partial
    mean(log_det); the final bpd math is done in the wrapper.
    """
    k = pl.program_id(1)

    @pl.when(k == 0)
    def _init():
        acc_p_ref[...] = jnp.zeros_like(acc_p_ref)
        acc_d_ref[...] = jnp.zeros_like(acc_d_ref)

    inv_b_f = jnp.float32(inv_b)
    # Per-chunk partial means (chunk_sum * 1/B): accumulator stays O(mean), so
    # large-B accumulation does not lose low-order f32 bits.
    acc_p_ref[...] += jnp.sum(log_p_ref[...].astype(jnp.float32)) * inv_b_f
    acc_d_ref[...] += jnp.sum(log_det_ref[...].astype(jnp.float32)) * inv_b_f

    @pl.when(k == pl.num_programs(1) - 1)
    def _finalize():
        lane = lax.broadcasted_iota(jnp.int32, out_ref.shape, 1)
        out_ref[...] = jnp.where(
            lane == 0, acc_p_ref[...],
            jnp.where(lane == 1, acc_d_ref[...], jnp.float32(0.0)))


# -----------------------------------------------------------------------------
# Wrappers
# -----------------------------------------------------------------------------
def _glow_loss_single_block(log_p, log_det, b, *, base_loss, inv_b, scale):
    itemsize = jnp.dtype(log_p.dtype).itemsize
    pack = 2 if itemsize == 2 else 1       # bf16/f16 pack 2x along sublanes
    fold_rows = 8 * pack
    # Lane-dense fold only: fold onto sublanes iff cols stays a multiple of 128,
    # otherwise keep a single (1, B) row (block == full array, so no (8,128)
    # divisibility constraint applies).
    if b >= fold_rows * 128 and b % (fold_rows * 128) == 0:
        rows, cols = fold_rows, b // fold_rows
    else:
        rows, cols = 1, b
    log_p2 = log_p.reshape(rows, cols)
    log_det2 = log_det.reshape(rows, cols)

    kernel = functools.partial(_glow_loss_single_block_kernel,
                               base_loss=base_loss, inv_b=inv_b, scale=scale)
    cost = pl.CostEstimate(
        flops=4 * b,
        transcendentals=0,
        bytes_accessed=2 * b * itemsize + 128 * 4)

    out = pl.pallas_call(
        kernel,
        out_shape=jax.ShapeDtypeStruct((1, 128), jnp.float32),
        in_specs=[
            pl.BlockSpec((rows, cols), lambda: (0, 0)),
            pl.BlockSpec((rows, cols), lambda: (0, 0)),
        ],
        out_specs=pl.BlockSpec((1, 128), lambda: (0, 0)),
        cost_estimate=cost,
    )(log_p2, log_det2)
    return out  # (1, 128) packed row, lanes 0..2 = (loss, logp, logdet) bpd


def _glow_loss_chunked(log_p, log_det, b, *, base_loss, inv_b, scale, chunk_cols):
    itemsize = jnp.dtype(log_p.dtype).itemsize
    rows = 16 if itemsize == 2 else 8      # sublane-dense for packed dtypes
    chunk_elems = rows * chunk_cols
    num_chunks = -(-b // chunk_elems)
    # Split chunks across the two TensorCores (v7x) only when there is enough
    # work to amortize it; a "parallel" axis of 2 is a harmless serial loop on
    # single-TC chips (v5e/v6e).
    nsplit = 2 if num_chunks >= 4 else 1
    num_chunks = -(-num_chunks // nsplit) * nsplit
    padded_b = num_chunks * chunk_elems

    if padded_b != b:
        pad = padded_b - b
        log_p = jnp.pad(log_p, (0, pad))      # zeros contribute 0 to the sums
        log_det = jnp.pad(log_det, (0, pad))

    cols = padded_b // rows
    log_p2 = log_p.reshape(rows, cols)
    log_det2 = log_det.reshape(rows, cols)

    half = num_chunks // nsplit
    kernel = functools.partial(_glow_loss_chunked_kernel, inv_b=inv_b)
    cost = pl.CostEstimate(
        flops=4 * padded_b,
        transcendentals=0,
        bytes_accessed=2 * padded_b * itemsize + nsplit * 128 * 4)

    out = pl.pallas_call(
        kernel,
        out_shape=jax.ShapeDtypeStruct((nsplit, 128), jnp.float32),
        grid=(nsplit, half),
        in_specs=[
            pl.BlockSpec((rows, chunk_cols), lambda c, k: (0, c * half + k)),
            pl.BlockSpec((rows, chunk_cols), lambda c, k: (0, c * half + k)),
        ],
        out_specs=pl.BlockSpec((1, 128), lambda c, k: (c, 0)),
        scratch_shapes=[
            pltpu.VMEM((1, 128), jnp.float32),   # running mean(log_p)
            pltpu.VMEM((1, 128), jnp.float32),   # running mean(log_det)
        ],
        compiler_params=pltpu.CompilerParams(
            dimension_semantics=("parallel", "arbitrary")),
        cost_estimate=cost,
    )(log_p2, log_det2)

    # Combine the (<=2) per-core partial means; tiny scalar math, fused by XLA.
    part = out.sum(axis=0)
    mean_p = part[0]
    mean_d = part[1]
    loss_bpd = -(base_loss + mean_p + mean_d) * scale
    logp_bpd = mean_p * scale
    logdet_bpd = mean_d * scale
    return loss_bpd, logp_bpd, logdet_bpd


def glow_loss(log_p, log_det, *, input_channels, input_size, n_bins,
              use_pallas=None, return_packed=False,
              single_block_max_elems=_SINGLE_BLOCK_MAX_ELEMS,
              chunk_cols=None):
    """Pallas implementation of GlowLoss.forward.

    log_p:   [B] float (any float dtype; cast to f32 inside the kernel)
    log_det: [B] float
    Returns (loss_bpd, log_p_bpd, log_det_bpd) scalars (or a packed (3,) row
    if return_packed=True), matching the PyTorch module.
    """
    n_pixels = input_size ** 2 * input_channels
    base_loss = -math.log(n_bins) * n_pixels
    scale = 1.0 / (LN2 * float(n_pixels))

    b = log_p.shape[0]
    assert log_det.shape[0] == b
    inv_b = 1.0 / float(b)

    if use_pallas is None:
        use_pallas = b >= _JNP_DISPATCH_THRESHOLD

    if not use_pallas:
        # Tiny batches: a pallas_call is pure launch + DMA overhead here; let
        # XLA fuse the two reductions into the producer instead.
        mean_p = jnp.sum(log_p.astype(jnp.float32)) * inv_b
        mean_d = jnp.sum(log_det.astype(jnp.float32)) * inv_b
        loss_bpd = -(base_loss + mean_p + mean_d) * scale
        logp_bpd = mean_p * scale
        logdet_bpd = mean_d * scale
        if return_packed:
            return jnp.stack([loss_bpd, logp_bpd, logdet_bpd])
        return loss_bpd, logp_bpd, logdet_bpd

    if b <= single_block_max_elems:
        out = _glow_loss_single_block(
            log_p, log_det, b, base_loss=base_loss, inv_b=inv_b, scale=scale)
        if return_packed:
            return out[0, :3]
        row = out[0, :3]     # one slice around the custom call, then unpack
        return row[0], row[1], row[2]

    if chunk_cols is None:
        chunk_cols = _default_chunk_cols()
    result = _glow_loss_chunked(
        log_p, log_det, b, base_loss=base_loss, inv_b=inv_b, scale=scale,
        chunk_cols=chunk_cols)
    if return_packed:
        return jnp.stack(result)
    return result


def glow_loss_ref(log_p, log_det, *, input_channels, input_size, n_bins):
    # Pure-JAX reference mirroring the PyTorch forward exactly.
    n_pixels = input_size ** 2 * input_channels
    base_loss = -math.log(n_bins) * n_pixels
    log_det_m = jnp.mean(log_det)
    loss = base_loss + log_p + log_det_m
    return (
        jnp.mean(-loss / (LN2 * n_pixels)),
        jnp.mean(log_p / (LN2 * n_pixels)),
        jnp.mean(log_det_m / (LN2 * n_pixels)),
    )


if __name__ == "__main__":
    # Module config consistent with an input of shape [B, 4, 16, 16].
    input_channels = 4
    input_size = 16
    n_bins = 256
    cfg = dict(input_channels=input_channels, input_size=input_size, n_bins=n_bins)

    key = jax.random.PRNGKey(0)
    k1, k2, k3, k4 = jax.random.split(key, 4)

    # --- 1) Shipped small-batch case: force the single-block Pallas path. ---
    b_small = 8
    log_p_s = jax.random.normal(k1, (b_small,), dtype=jnp.float32) * 100.0 - 5000.0
    log_det_s = jax.random.normal(k2, (b_small,), dtype=jnp.float32) * 10.0 + 200.0

    out_s = jax.block_until_ready(glow_loss(log_p_s, log_det_s, use_pallas=True, **cfg))
    ref_s = jax.block_until_ready(glow_loss_ref(log_p_s, log_det_s, **cfg))
    for o, r in zip(out_s, ref_s):
        assert jnp.allclose(o, r, rtol=1e-5, atol=1e-5), (o, r)

    # Default dispatch at this size takes the fused plain-jnp path.
    out_j = jax.block_until_ready(glow_loss(log_p_s, log_det_s, **cfg))
    for o, r in zip(out_j, ref_s):
        assert jnp.allclose(o, r, rtol=1e-5, atol=1e-5), (o, r)

    # --- 2) Chunked "arbitrary"-grid path (small chunk size to keep shapes tiny):
    #        exercises accumulator init/finalize, zero padding of the tail, and
    #        the 2-way TensorCore split of the chunk range. ---
    b_big = 8 * 512 * 3 + 37
    log_p_b = jax.random.normal(k3, (b_big,), dtype=jnp.float32) * 100.0 - 5000.0
    log_det_b = jax.random.normal(k4, (b_big,), dtype=jnp.float32) * 10.0 + 200.0

    out_b = jax.block_until_ready(
        glow_loss(log_p_b, log_det_b, use_pallas=True,
                  single_block_max_elems=1024, chunk_cols=512, **cfg))
    ref_b = jax.block_until_ready(glow_loss_ref(log_p_b, log_det_b, **cfg))
    for o, r in zip(out_b, ref_b):
        assert jnp.allclose(o, r, rtol=1e-4, atol=1e-5), (o, r)

    print("KERNEL_OK")
</pallas_src>

<mosaic_0001>
module attributes {stable_mosaic.version = 11 : i64} {
  func.func @_glow_loss_single_block_kernel(%arg0: memref<1x8xf32, #tpu.memory_space<vmem>>, %arg1: memref<1x8xf32, #tpu.memory_space<vmem>>, %arg2: memref<1x128xf32, #tpu.memory_space<vmem>>) attributes {dimension_semantics = [], scalar_prefetch = 0 : i64, scratch_operands = 0 : i64, tpu.core_type = #tpu.core_type<tc>} {
    %c0 = arith.constant 0 : index
    %c0_0 = arith.constant 0 : index
    %0 = vector.load %arg0[%c0, %c0_0] : memref<1x8xf32, #tpu.memory_space<vmem>>, vector<1x8xf32>
    %c0_1 = arith.constant 0 : index
    %c0_2 = arith.constant 0 : index
    %1 = vector.load %arg1[%c0_1, %c0_2] : memref<1x8xf32, #tpu.memory_space<vmem>>, vector<1x8xf32>
    %2 = vector.shape_cast %0 : vector<1x8xf32> to vector<1x1x8xf32>
    %cst = arith.constant dense<0.000000e+00> : vector<1xf32>
    %3 = vector.multi_reduction <add>, %2, %cst [1, 2] : vector<1x1x8xf32> to vector<1xf32>
    %4 = vector.shape_cast %3 : vector<1xf32> to vector<1x1x1xf32>
    %5 = vector.extract %4[0, 0, 0] : f32 from vector<1x1x1xf32>
    %cst_3 = arith.constant 1.250000e-01 : f32
    %6 = arith.mulf %5, %cst_3 : f32
    %7 = vector.shape_cast %1 : vector<1x8xf32> to vector<1x1x8xf32>
    %cst_4 = arith.constant dense<0.000000e+00> : vector<1xf32>
    %8 = vector.multi_reduction <add>, %7, %cst_4 [1, 2] : vector<1x1x8xf32> to vector<1xf32>
    %9 = vector.shape_cast %8 : vector<1xf32> to vector<1x1x1xf32>
    %10 = vector.extract %9[0, 0, 0] : f32 from vector<1x1x1xf32>
    %cst_5 = arith.constant 1.250000e-01 : f32
    %11 = arith.mulf %10, %cst_5 : f32
    %cst_6 = arith.constant -5678.26171 : f32
    %12 = arith.addf %cst_6, %6 : f32
    %13 = arith.addf %12, %11 : f32
    %cst_7 = arith.constant 0.000000e+00 : f32
    %14 = arith.subf %cst_7, %13 : f32
    %cst_8 = arith.constant 0.00140888186 : f32
    %15 = arith.mulf %14, %cst_8 : f32
    %cst_9 = arith.constant 0.00140888186 : f32
    %16 = arith.mulf %6, %cst_9 : f32
    %cst_10 = arith.constant 0.00140888186 : f32
    %17 = arith.mulf %11, %cst_10 : f32
    %18 = tpu.iota {dimensions = array<i32: 1>} : vector<1x128xi32>
    %c0_i32 = arith.constant 0 : i32
    %19 = vector.broadcast %c0_i32 : i32 to vector<1x128xi32>
    %20 = arith.cmpi eq, %18, %19 : vector<1x128xi32>
    %c1_i32 = arith.constant 1 : i32
    %21 = vector.broadcast %c1_i32 : i32 to vector<1x128xi32>
    %22 = arith.cmpi eq, %18, %21 : vector<1x128xi32>
    %c2_i32 = arith.constant 2 : i32
    %23 = vector.broadcast %c2_i32 : i32 to vector<1x128xi32>
    %24 = arith.cmpi eq, %18, %23 : vector<1x128xi32>
    %cst_11 = arith.constant 0.000000e+00 : f32
    %25 = vector.broadcast %17 : f32 to vector<1x128xf32>
    %26 = vector.broadcast %cst_11 : f32 to vector<1x128xf32>
    %27 = arith.select %24, %25, %26 : vector<1x128xi1>, vector<1x128xf32>
    %28 = vector.broadcast %16 : f32 to vector<1x128xf32>
    %29 = arith.select %22, %28, %27 : vector<1x128xi1>, vector<1x128xf32>
    %30 = vector.broadcast %15 : f32 to vector<1x128xf32>
    %31 = arith.select %20, %30, %29 : vector<1x128xi1>, vector<1x128xf32>
    %c0_12 = arith.constant 0 : index
    %c0_13 = arith.constant 0 : index
    %32 = vector.load %arg2[%c0_12, %c0_13] : memref<1x128xf32, #tpu.memory_space<vmem>>, vector<1x128xf32>
    tpu.vector_store %arg2[%c0_12, %c0_13], %31 {strides = array<i32>} : memref<1x128xf32, #tpu.memory_space<vmem>>, vector<1x128xf32>,
    return
  }
}

</mosaic_0001>

<llo_original>
// kernel: tpu_custom_call.1
$region0: #{tpu_custom_call.1}
  #allocation0 [shape = 'u32[]', space=smem, size = 0x4, offset = 0x4, fixed_abs, tag = 'smem constant byte address 0x4 - core index']
  #allocation1 [shape = 'u32[144,128]{1,0:T(1,128)}', space=vmem, size = 0x12000, scoped, tag = 'internal scratch']
  %s0 = inlined_call_operand.hbm [shape: f32[1,8], index: 0, kind: input, shape index: {}]
  %s1 = inlined_call_operand.vmem [shape: f32[1,8], index: 1, kind: input, shape index: {}]
  %s2 = inlined_call_operand.hbm [shape: f32[1,128], index: 2, kind: output, shape index: {}]
  %s3 = sld [smem:[#allocation0]]
  $region22: #{tpu_custom_call.1} parent=0
    _
  %s5 = ssub.s32 1, %s3
  %s6 = scalar_select 0, %s5, %s3
  $region1: #{tpu_custom_call.1} parent=0
    #allocation2 [shape = 'u8[512]{0}', space=vmem, size = 0x400, scoped, tag = 'input window, operand 0, single buffered']
    #allocation3 [shape = 's32[1]{0}', space=sflag, size = 0x4, scoped, tag = 'scoped memory for tpu_custom_call.1']
    #allocation4 [shape = 's32[1]{0}', space=sflag, size = 0x4, scoped, tag = 'scoped memory for tpu_custom_call.1']
    #allocation5 [shape = 'u8[512]{0}', space=vmem, size = 0x400, scoped, tag = 'output window, operand 0, single buffered']
    %7 = vsyncpa [#allocation3], 0
    %8 = vsyncpa [#allocation4], 0
    // Predicated region
    $region2: #{tpu_custom_call.1} parent=1 // pred_check
      _
    $region3: #{tpu_custom_call.1} parent=1 // pred_check_branch
      %10 = sbr.rel (0) target = $region5
    $region4: #{tpu_custom_call.1} parent=1 // pred_region
      %s12 = ssub.s32 16, 16
      %13 = vsyncadd [#allocation3], %s12
      %s15 = sshll.u32 [#allocation2], 4
      %s16 = int_to_ptr.vmem [resolvable:$true] %s15
      %18 = dma.hbm_to_vmem [thread:$0]  %s0, 16, %s16, [#allocation3]
    $region5: #{tpu_custom_call.1} parent=1 // pred_fallthru
      _
    // Predicated region
    $region6: #{tpu_custom_call.1} parent=1 // pred_check
      _
    $region7: #{tpu_custom_call.1} parent=1 // pred_check_branch
      %20 = sbr.rel (0) target = $region9
    $region8: #{tpu_custom_call.1} parent=1 // pred_region
      _
    $region9: #{tpu_custom_call.1} parent=1 // pred_fallthru
      _
    // Predicated region
    $region10: #{tpu_custom_call.1} parent=1 // pred_check
      _
    $region11: #{tpu_custom_call.1} parent=1 // pred_check_branch
      %22 = sbr.rel (0) target = $region13
    $region12: #{tpu_custom_call.1} parent=1 // pred_region
      %23 = dma.done [#allocation3], 16
    $region13: #{tpu_custom_call.1} parent=1 // pred_fallthru
      _
    %v24 = vld [vmem:[#allocation2] sm:$0x1]
    %v25 = vld [vmem:[%s1] sm:$0x1]
    %vm26 = vcmask 57344
    %v27 = vsel %vm26, %v24, 0.0
    %28 = vadd.xlane.f32.xlu0 %v27
    %v29 = vpop.xlane.xlu0 %28
    %v30 = vrot.slane %v29, 4
    %v31 = vadd.f32 %v29, %v30
    %v32 = vrot.slane %v31, 2
    %v33 = vadd.f32 %v31, %v32
    %v34 = vrot.slane %v33, 1
    %v35 = vadd.f32 %v33, %v34
    %s36 = vtos %v35
    %s37 = smul.f32 %s36, 0.125
    %v38 = vsel %vm26, %v25, 0.0
    %39 = vadd.xlane.f32.xlu0 %v38
    %v40 = vpop.xlane.xlu0 %39
    %v41 = vrot.slane %v40, 4
    %v42 = vadd.f32 %v40, %v41
    %v43 = vrot.slane %v42, 2
    %v44 = vadd.f32 %v42, %v43
    %v45 = vrot.slane %v44, 1
    %v46 = vadd.f32 %v44, %v45
    %s47 = vtos %v46
    %s48 = smul.f32 %s47, 0.125
    %s49 = sadd.f32 %s37, -5678.2617
    %s50 = sadd.f32 %s49, %s48
    %s51 = ssub.f32 0.0, %s50
    %s52 = smul.f32 %s51, 0.0014088819
    %s53 = smul.f32 %s37, 0.0014088819
    %s54 = smul.f32 %s48, 0.0014088819
    %v55 = vlaneseq
    %v56 = vand.u32 %v55, 127
    %vm57 = vcmp.eq.s32.totalorder %v56, 0
    %vm58 = vcmp.eq.s32.totalorder %v56, 1
    %vm59 = vcmp.eq.s32.totalorder %v56, 2
    %v60 = vstv %s54
    %v61 = vsel %vm59, %v60, 0.0
    %v62 = vstv %s53
    %v63 = vsel %vm58, %v62, %v61
    %v64 = vstv %s52
    %v65 = vsel %vm57, %v64, %v63
    %66 = vst [vmem:[#allocation5] sm:$0x1] %v65
    // Predicated region
    $region14: #{tpu_custom_call.1} parent=1 // pred_check
      _
    $region15: #{tpu_custom_call.1} parent=1 // pred_check_branch
      %68 = sbr.rel (0) target = $region17
    $region16: #{tpu_custom_call.1} parent=1 // pred_region
      %s70 = ssub.s32 16, 16
      %71 = vsyncadd [#allocation4], %s70
      %s73 = sshll.u32 [#allocation5], 4
      %s74 = int_to_ptr.vmem [resolvable:$true] %s73
      %76 = dma.vmem_to_hbm [thread:$0]  %s74, 16, %s2, [#allocation4]
    $region17: #{tpu_custom_call.1} parent=1 // pred_fallthru
      _
    // Predicated region
    $region18: #{tpu_custom_call.1} parent=1 // pred_check
      _
    $region19: #{tpu_custom_call.1} parent=1 // pred_check_branch
      %78 = sbr.rel (0) target = $region21
    $region20: #{tpu_custom_call.1} parent=1 // pred_region
      %79 = dma.done [#allocation4], 16
    $region21: #{tpu_custom_call.1} parent=1 // pred_fallthru
      _
    %80 = vsyncpa [#allocation3], 1
    %81 = vsyncpa [#allocation4], 1

</llo_original>
